<compile_context>
chip_gen: v7x
topology: tpu7x:2x2x1
jax: 0.10.0
libtpu: 0.0.40
codegen_flags: <defaults>
</compile_context>

<pallas_src>
import functools

import jax
import jax.numpy as jnp
from jax.experimental import pallas as pl
from jax.experimental.pallas import tpu as pltpu

HIDDEN = 2          # the module hard-codes nn.Linear(input_dim, 2) / nn.Linear(2, output_dim)
LANE = 128          # vreg lane width
SUBLANE = 8         # vreg sublane count (f32)
MAX_LANE_TILE = 1024


def _round_up(n, m):
    return ((n + m - 1) // m) * m


def xor_mlp_kernel(params_ref, x_ref, o_ref, *, input_dim, output_dim):
    """VPU/EUP-only XOR-MLP forward on one lane/sublane-dense batch tile.

    params_ref : SMEM (n_params,) f32, layout [w1 | b1 | w2 | b2]
    x_ref      : VMEM (input_dim,  R, C) in the activation dtype
    o_ref      : VMEM (output_dim, R, C) in the activation dtype
    """
    w1_off = 0
    b1_off = HIDDEN * input_dim
    w2_off = b1_off + HIDDEN
    b2_off = w2_off + output_dim * HIDDEN

    # Per-feature planes are full (R, C) = (8k, 128m) dense vreg slabs.
    xs = [x_ref[d].astype(jnp.float32) for d in range(input_dim)]

    # Hidden layer: input_dim FMAs + bias + sigmoid per hidden unit (VPU + EUP).
    hidden = []
    for h in range(HIDDEN):
        z = xs[0] * params_ref[w1_off + h * input_dim]
        for d in range(1, input_dim):
            z = z + xs[d] * params_ref[w1_off + h * input_dim + d]
        hidden.append(jax.nn.sigmoid(z + params_ref[b1_off + h]))

    # Output layer (no final activation, matching the PyTorch module).
    for o in range(output_dim):
        y = hidden[0] * params_ref[w2_off + o * HIDDEN]
        for h in range(1, HIDDEN):
            y = y + hidden[h] * params_ref[w2_off + o * HIDDEN + h]
        o_ref[o] = (y + params_ref[b2_off + o]).astype(o_ref.dtype)


def _xor_forward_planes(x3, params, *, output_dim, rows_per_block, vmem_limit):
    """Core call: x3 is feature-major (input_dim, n_rows, C), already aligned."""
    input_dim, n_rows, C = x3.shape
    grid = (pl.cdiv(n_rows, rows_per_block),)   # Pallas handles the trailing block
    kernel = functools.partial(xor_mlp_kernel, input_dim=input_dim, output_dim=output_dim)
    return pl.pallas_call(
        kernel,
        out_shape=jax.ShapeDtypeStruct((output_dim, n_rows, C), x3.dtype),
        grid=grid,
        in_specs=[
            pl.BlockSpec(memory_space=pltpu.MemorySpace.SMEM),   # 9 scalars, loaded once
            pl.BlockSpec((input_dim, rows_per_block, C), lambda i: (0, i, 0)),
        ],
        out_specs=pl.BlockSpec((output_dim, rows_per_block, C), lambda i: (0, i, 0)),
        compiler_params=pltpu.CompilerParams(
            dimension_semantics=("parallel",),   # batch tiles independent -> v7x 2 TCs
            vmem_limit_bytes=vmem_limit,
        ),
    )(params, x3)


def xor_forward(x, w1, b1, w2, b2, *, block_elems=256 * 1024):
    """Pallas forward of the XOR MLP.

    x : (B, input_dim), any float dtype (kept end-to-end; compute is f32)
    w1: (HIDDEN, input_dim), b1: (HIDDEN,)   -- PyTorch nn.Linear layouts
    w2: (output_dim, HIDDEN), b2: (output_dim,)
    returns (B, output_dim) in x.dtype
    """
    B, input_dim = x.shape
    output_dim = w2.shape[0]
    assert w1.shape == (HIDDEN, input_dim)
    assert b1.shape == (HIDDEN,)
    assert w2.shape == (output_dim, HIDDEN)
    assert b2.shape == (output_dim,)

    itemsize = jnp.dtype(x.dtype).itemsize
    sub = max(SUBLANE, 32 // itemsize)            # sublane pack: 8 (f32), 16 (bf16)

    # ---- tiling: lane width C, rows per block R ---------------------------
    C = min(MAX_LANE_TILE, max(LANE, (B // (SUBLANE * LANE)) * LANE))
    b_pad = _round_up(B, sub * C)                 # only pad the ragged tail (< sub*C rows)
    n_rows = b_pad // C                           # multiple of `sub`

    R = max(sub, (block_elems // C) // sub * sub)
    max_r_vmem = max(sub, ((24 << 20) // (2 * (input_dim + output_dim) * C * itemsize)) // sub * sub)
    R = min(R, n_rows, max_r_vmem)
    if pl.cdiv(n_rows, R) == 1 and n_rows >= 2 * sub:
        R = _round_up(pl.cdiv(n_rows, 2), sub)    # >=2 grid steps so both v7x TCs run
    vmem_limit = int(2 * (input_dim + output_dim) * R * C * itemsize * 1.5) + (1 << 20)

    # ---- layout plumbing (single transpose pass; pad only if B is ragged) --
    # TODO(synk): accept feature-major activations upstream to drop this last wrapper copy.
    if b_pad != B:
        x = jnp.pad(x, ((0, b_pad - B), (0, 0)))
    x3 = x.T.reshape(input_dim, n_rows, C)        # reshape is free; dtype preserved

    params = jnp.concatenate(
        [w1.reshape(-1), b1.reshape(-1), w2.reshape(-1), b2.reshape(-1)]
    ).astype(jnp.float32)

    out3 = _xor_forward_planes(x3, params, output_dim=output_dim,
                               rows_per_block=R, vmem_limit=vmem_limit)

    out2 = out3.reshape(output_dim, b_pad)
    if output_dim == 1:
        return out2.reshape(b_pad, 1)[:B]         # free reshape + tail slice only
    return out2[:, :B].T


def init_params(key, input_dim=2, output_dim=1):
    """Deterministic init mimicking nn.Linear's uniform(-1/sqrt(fan_in), 1/sqrt(fan_in))."""
    k1, k2, k3, k4 = jax.random.split(key, 4)
    bound1 = 1.0 / jnp.sqrt(input_dim)
    bound2 = 1.0 / jnp.sqrt(HIDDEN)
    w1 = jax.random.uniform(k1, (HIDDEN, input_dim), jnp.float32, -bound1, bound1)
    b1 = jax.random.uniform(k2, (HIDDEN,), jnp.float32, -bound1, bound1)
    w2 = jax.random.uniform(k3, (output_dim, HIDDEN), jnp.float32, -bound2, bound2)
    b2 = jax.random.uniform(k4, (output_dim,), jnp.float32, -bound2, bound2)
    return w1, b1, w2, b2


def _ref_forward(x, w1, b1, w2, b2):
    h = jax.nn.sigmoid(x.astype(jnp.float32) @ w1.T + b1)
    return h @ w2.T + b2


if __name__ == "__main__":
    key = jax.random.PRNGKey(0)
    w1, b1, w2, b2 = init_params(key, input_dim=2, output_dim=1)

    # 1) XOR truth table (B=4): small-B path, single tiny lane-aligned block.
    x = jnp.array([[0.0, 0.0],
                   [0.0, 1.0],
                   [1.0, 0.0],
                   [1.0, 1.0]], dtype=jnp.float32)
    out = jax.block_until_ready(xor_forward(x, w1, b1, w2, b2))
    ref = _ref_forward(x, w1, b1, w2, b2)
    assert out.shape == (4, 1) and out.dtype == x.dtype
    assert jnp.allclose(out, ref, atol=1e-5), (out, ref)

    # 2) Larger ragged f32 batch: multi-step grid + partial trailing block.
    xb = jax.random.uniform(jax.random.PRNGKey(1), (40000, 2), jnp.float32)
    outb = jax.block_until_ready(xor_forward(xb, w1, b1, w2, b2, block_elems=16 * 1024))
    refb = _ref_forward(xb, w1, b1, w2, b2)
    assert outb.shape == (40000, 1)
    assert jnp.allclose(outb, refb, atol=1e-5)

    # 3) bf16 activations: HBM I/O stays bf16 (half the bytes), compute in f32.
    xh = xb.astype(jnp.bfloat16)
    outh = jax.block_until_ready(xor_forward(xh, w1, b1, w2, b2, block_elems=16 * 1024))
    refh = _ref_forward(xh, w1, b1, w2, b2)
    assert outh.shape == (40000, 1) and outh.dtype == jnp.bfloat16
    assert jnp.allclose(outh.astype(jnp.float32), refh, atol=3e-2)

    print("KERNEL_OK")
</pallas_src>

<mosaic_0001>
module attributes {stable_mosaic.version = 11 : i64} {
  func.func @xor_mlp_kernel(%arg0: i32, %arg1: memref<9xf32, #tpu.memory_space<smem>>, %arg2: memref<2x8x128xf32, #tpu.memory_space<vmem>>, %arg3: memref<1x8x128xf32, #tpu.memory_space<vmem>>) attributes {dimension_semantics = [#tpu.dimension_semantics<parallel>], iteration_bounds = array<i64: 1>, scalar_prefetch = 0 : i64, scratch_operands = 0 : i64, tpu.core_type = #tpu.core_type<tc>, window_params = [{transform_indices = @transform_0, window_bounds = array<i64: 9>}, {transform_indices = @transform_1, window_bounds = array<i64: 2, 8, 128>}, {transform_indices = @transform_2, window_bounds = array<i64: 1, 8, 128>}]} {
    %c0 = arith.constant 0 : index
    %c0_0 = arith.constant 0 : index
    %c0_1 = arith.constant 0 : index
    %0 = vector.load %arg2[%c0, %c0_0, %c0_1] : memref<2x8x128xf32, #tpu.memory_space<vmem>>, vector<1x8x128xf32>
    %1 = vector.shape_cast %0 : vector<1x8x128xf32> to vector<8x128xf32>
    %c1 = arith.constant 1 : index
    %c0_2 = arith.constant 0 : index
    %c0_3 = arith.constant 0 : index
    %2 = vector.load %arg2[%c1, %c0_2, %c0_3] : memref<2x8x128xf32, #tpu.memory_space<vmem>>, vector<1x8x128xf32>
    %3 = vector.shape_cast %2 : vector<1x8x128xf32> to vector<8x128xf32>
    %c0_4 = arith.constant 0 : index
    %4 = memref.load %arg1[%c0_4] : memref<9xf32, #tpu.memory_space<smem>>
    %5 = vector.broadcast %4 : f32 to vector<8x128xf32>
    %6 = arith.mulf %1, %5 : vector<8x128xf32>
    %c1_5 = arith.constant 1 : index
    %7 = memref.load %arg1[%c1_5] : memref<9xf32, #tpu.memory_space<smem>>
    %8 = vector.broadcast %7 : f32 to vector<8x128xf32>
    %9 = arith.mulf %3, %8 : vector<8x128xf32>
    %10 = arith.addf %6, %9 : vector<8x128xf32>
    %c4 = arith.constant 4 : index
    %11 = memref.load %arg1[%c4] : memref<9xf32, #tpu.memory_space<smem>>
    %12 = vector.broadcast %11 : f32 to vector<8x128xf32>
    %13 = arith.addf %10, %12 : vector<8x128xf32>
    %14 = arith.negf %13 : vector<8x128xf32>
    %15 = math.exp %14 : vector<8x128xf32>
    %cst = arith.constant 1.000000e+00 : f32
    %16 = vector.broadcast %cst : f32 to vector<8x128xf32>
    %17 = arith.addf %16, %15 : vector<8x128xf32>
    %18 = arith.divf %16, %17 : vector<8x128xf32>
    %c2 = arith.constant 2 : index
    %19 = memref.load %arg1[%c2] : memref<9xf32, #tpu.memory_space<smem>>
    %20 = vector.broadcast %19 : f32 to vector<8x128xf32>
    %21 = arith.mulf %1, %20 : vector<8x128xf32>
    %c3 = arith.constant 3 : index
    %22 = memref.load %arg1[%c3] : memref<9xf32, #tpu.memory_space<smem>>
    %23 = vector.broadcast %22 : f32 to vector<8x128xf32>
    %24 = arith.mulf %3, %23 : vector<8x128xf32>
    %25 = arith.addf %21, %24 : vector<8x128xf32>
    %c5 = arith.constant 5 : index
    %26 = memref.load %arg1[%c5] : memref<9xf32, #tpu.memory_space<smem>>
    %27 = vector.broadcast %26 : f32 to vector<8x128xf32>
    %28 = arith.addf %25, %27 : vector<8x128xf32>
    %29 = arith.negf %28 : vector<8x128xf32>
    %30 = math.exp %29 : vector<8x128xf32>
    %cst_6 = arith.constant 1.000000e+00 : f32
    %31 = vector.broadcast %cst_6 : f32 to vector<8x128xf32>
    %32 = arith.addf %31, %30 : vector<8x128xf32>
    %33 = arith.divf %31, %32 : vector<8x128xf32>
    %c6 = arith.constant 6 : index
    %34 = memref.load %arg1[%c6] : memref<9xf32, #tpu.memory_space<smem>>
    %35 = vector.broadcast %34 : f32 to vector<8x128xf32>
    %36 = arith.mulf %18, %35 : vector<8x128xf32>
    %c7 = arith.constant 7 : index
    %37 = memref.load %arg1[%c7] : memref<9xf32, #tpu.memory_space<smem>>
    %38 = vector.broadcast %37 : f32 to vector<8x128xf32>
    %39 = arith.mulf %33, %38 : vector<8x128xf32>
    %40 = arith.addf %36, %39 : vector<8x128xf32>
    %c8 = arith.constant 8 : index
    %41 = memref.load %arg1[%c8] : memref<9xf32, #tpu.memory_space<smem>>
    %42 = vector.broadcast %41 : f32 to vector<8x128xf32>
    %43 = arith.addf %40, %42 : vector<8x128xf32>
    %c0_7 = arith.constant 0 : index
    %c0_8 = arith.constant 0 : index
    %c0_9 = arith.constant 0 : index
    %44 = vector.load %arg3[%c0_7, %c0_8, %c0_9] : memref<1x8x128xf32, #tpu.memory_space<vmem>>, vector<1x8x128xf32>
    %45 = vector.shape_cast %44 : vector<1x8x128xf32> to vector<8x128xf32>
    %46 = vector.shape_cast %43 : vector<8x128xf32> to vector<1x8x128xf32>
    tpu.vector_store %arg3[%c0_7, %c0_8, %c0_9], %46 {strides = array<i32>} : memref<1x8x128xf32, #tpu.memory_space<vmem>>, vector<1x8x128xf32>,
    return
  }
  func.func @transform_0(%arg0: i32) -> i32 {
    %c0_i32 = arith.constant 0 : i32
    %c0_i32_0 = arith.constant 0 : i32
    return %c0_i32 : i32
  }
  func.func @transform_1(%arg0: i32) -> (i32, i32, i32) {
    %c0_i32 = arith.constant 0 : i32
    %c0_i32_0 = arith.constant 0 : i32
    %c0_i32_1 = arith.constant 0 : i32
    return %c0_i32, %arg0, %c0_i32_0 : i32, i32, i32
  }
  func.func @transform_2(%arg0: i32) -> (i32, i32, i32) {
    %c0_i32 = arith.constant 0 : i32
    %c0_i32_0 = arith.constant 0 : i32
    %c0_i32_1 = arith.constant 0 : i32
    return %c0_i32, %arg0, %c0_i32_0 : i32, i32, i32
  }
}

</mosaic_0001>

<llo_original>
// kernel: tpu_custom_call.1
$region0: #{tpu_custom_call.1}
  #allocation0 [shape = 'u32[]', space=smem, size = 0x4, offset = 0x4, fixed_abs, tag = 'smem constant byte address 0x4 - core index']
  #allocation1 [shape = 'u32[144,128]{1,0:T(1,128)}', space=vmem, size = 0x12000, scoped, tag = 'internal scratch']
  %s0 = inlined_call_operand.hbm [shape: f32[9], index: 0, kind: input, shape index: {}]
  %s1 = inlined_call_operand.hbm [shape: f32[2,8,128], index: 1, kind: input, shape index: {}]
  %s2 = inlined_call_operand.hbm [shape: f32[1,8,128], index: 2, kind: output, shape index: {}]
  %s3 = sld [smem:[#allocation0]]
  $region26: #{tpu_custom_call.1} parent=0
    _
  %s5 = ssub.s32 1, %s3
  %s6 = scalar_select 0, %s5, %s3
  $region1: #{tpu_custom_call.1} parent=0
    #allocation2 [shape = 'u8[512]{0}', space=smem, size = 0x200, scoped, tag = 'input window, operand 0, single buffered']
    #allocation3 [shape = 's32[1]{0}', space=sflag, size = 0x4, scoped, tag = 'scoped memory for tpu_custom_call.1']
    #allocation4 [shape = 's32[1]{0}', space=sflag, size = 0x4, scoped, tag = 'scoped memory for tpu_custom_call.1']
    #allocation5 [shape = 's32[1]{0}', space=sflag, size = 0x4, scoped, tag = 'scoped memory for tpu_custom_call.1']
    #allocation6 [shape = 'u8[8192]{0}', space=vmem, size = 0x2000, scoped, tag = 'input window, operand 1, single buffered']
    #allocation7 [shape = 'u8[4096]{0}', space=vmem, size = 0x1000, scoped, tag = 'output window, operand 0, single buffered']
    %7 = vsyncpa [#allocation5], 0
    %8 = vsyncpa [#allocation3], 0
    %9 = vsyncpa [#allocation4], 0
    // Predicated region
    $region2: #{tpu_custom_call.1} parent=1 // pred_check
      _
    $region3: #{tpu_custom_call.1} parent=1 // pred_check_branch
      %11 = sbr.rel (0) target = $region5
    $region4: #{tpu_custom_call.1} parent=1 // pred_region
      %s13 = ssub.s32 16, 16
      %14 = vsyncadd [#allocation5], %s13
      %17 = dma.hbm_to_smem %s0, 16, [#allocation2], [#allocation5]
    $region5: #{tpu_custom_call.1} parent=1 // pred_fallthru
      _
    // Predicated region
    $region6: #{tpu_custom_call.1} parent=1 // pred_check
      _
    $region7: #{tpu_custom_call.1} parent=1 // pred_check_branch
      %19 = sbr.rel (0) target = $region9
    $region8: #{tpu_custom_call.1} parent=1 // pred_region
      %s21 = ssub.s32 256, 256
      %22 = vsyncadd [#allocation3], %s21
      %s23 = sshll.u32 [#allocation6], 4
      %s24 = int_to_ptr.vmem [resolvable:$true] %s23
      %29 = dma.hbm_to_vmem [thread:$0]  %s1, 256, %s24, [#allocation3], 128, 128, 8
    $region9: #{tpu_custom_call.1} parent=1 // pred_fallthru
      _
    // Predicated region
    $region10: #{tpu_custom_call.1} parent=1 // pred_check
      _
    $region11: #{tpu_custom_call.1} parent=1 // pred_check_branch
      %31 = sbr.rel (0) target = $region13
    $region12: #{tpu_custom_call.1} parent=1 // pred_region
      %32 = dma.done [#allocation5], 16
    $region13: #{tpu_custom_call.1} parent=1 // pred_fallthru
      _
    // Predicated region
    $region14: #{tpu_custom_call.1} parent=1 // pred_check
      _
    $region15: #{tpu_custom_call.1} parent=1 // pred_check_branch
      %34 = sbr.rel (0) target = $region17
    $region16: #{tpu_custom_call.1} parent=1 // pred_region
      %35 = dma.done [#allocation3], 256
    $region17: #{tpu_custom_call.1} parent=1 // pred_fallthru
      _
    %36 = sfence
    %v37 = vld [vmem:[#allocation6] sm:$0xff]
    %s38 = scalar_lea.vmem [#allocation6], 8
    %v39 = vld [vmem:[%s38] sm:$0xff]
    %s40 = sld [smem:[#allocation2]]
    %v41 = vstv %s40
    %v42 = vmul.f32 %v37, %v41
    %s43 = sld [smem:[#allocation2 + $0x1]]
    %v44 = vstv %s43
    %v45 = vmul.f32 %v39, %v44
    %v46 = vadd.f32 %v42, %v45
    %s47 = sld [smem:[#allocation2 + $0x4]]
    %v48 = vstv %s47
    %v49 = vadd.f32 %v46, %v48
    %v50 = vxor.u32 %v49, 2147483648
    %v51 = vmul.f32 %v50, 1.442695
    %v52 = vpow.pop %v51
    %v53 = vadd.f32 %v52, 1.0
    %v54 = vrcp.pop %v53
    %v55 = vmul.f32 1.0, %v54
    %s56 = sld [smem:[#allocation2 + $0x2]]
    %v57 = vstv %s56
    %v58 = vmul.f32 %v37, %v57
    %s59 = sld [smem:[#allocation2 + $0x3]]
    %v60 = vstv %s59
    %v61 = vmul.f32 %v39, %v60
    %v62 = vadd.f32 %v58, %v61
    %s63 = sld [smem:[#allocation2 + $0x5]]
    %v64 = vstv %s63
    %v65 = vadd.f32 %v62, %v64
    %v66 = vxor.u32 %v65, 2147483648
    %v67 = vmul.f32 %v66, 1.442695
    %v68 = vpow.pop %v67
    %v69 = vadd.f32 %v68, 1.0
    %v70 = vrcp.pop %v69
    %v71 = vmul.f32 1.0, %v70
    %s72 = sld [smem:[#allocation2 + $0x6]]
    %v73 = vstv %s72
    %v74 = vmul.f32 %v55, %v73
    %s75 = sld [smem:[#allocation2 + $0x7]]
    %v76 = vstv %s75
    %v77 = vmul.f32 %v71, %v76
    %v78 = vadd.f32 %v74, %v77
    %s79 = sld [smem:[#allocation2 + $0x8]]
    %v80 = vstv %s79
    %v81 = vadd.f32 %v78, %v80
    %82 = vst [vmem:[#allocation7] sm:$0xff] %v81
    // Predicated region
    $region18: #{tpu_custom_call.1} parent=1 // pred_check
      _
    $region19: #{tpu_custom_call.1} parent=1 // pred_check_branch
      %84 = sbr.rel (0) target = $region21
    $region20: #{tpu_custom_call.1} parent=1 // pred_region
      %s86 = ssub.s32 128, 128
      %87 = vsyncadd [#allocation4], %s86
      %s89 = sshll.u32 [#allocation7], 4
      %s90 = int_to_ptr.vmem [resolvable:$true] %s89
      %92 = dma.vmem_to_hbm [thread:$0]  %s90, 128, %s2, [#allocation4]
    $region21: #{tpu_custom_call.1} parent=1 // pred_fallthru
      _
    // Predicated region
    $region22: #{tpu_custom_call.1} parent=1 // pred_check
      _
    $region23: #{tpu_custom_call.1} parent=1 // pred_check_branch
      %94 = sbr.rel (0) target = $region25
    $region24: #{tpu_custom_call.1} parent=1 // pred_region
      %95 = dma.done [#allocation4], 128
    $region25: #{tpu_custom_call.1} parent=1 // pred_fallthru
      _
    %96 = vsyncpa [#allocation3], 1
    %97 = vsyncpa [#allocation4], 1
    %98 = vsyncpa [#allocation5], 1

</llo_original>
